<compile_context>
chip_gen: v6e
topology: v6e:2x2x1
jax: 0.10.0
libtpu: 0.0.40
codegen_flags: <defaults>
</compile_context>

<pallas_src>
import functools

import jax
import jax.numpy as jnp
from jax.experimental import pallas as pl
from jax.experimental.pallas import tpu as pltpu

_LANES = 128
_NCORES = 2  # per-core partial sums; lets v7x use both TensorCores


def _round_up(x, m):
    return ((x + m - 1) // m) * m


def _combined_loss_kernel(pred_ref, tgt_ref, mask_ref, out_ref, *,
                          hw, rtile, alpha, gamma, eps, lam):
    """Grid = (core, tile). Accumulates 5 partial sums into out_ref[core]:
       [0] IoU intersection, [1] sum sigmoid(pred), [2] sum target,
       [3] weighted-MSE sum (mask loss), [4] focal-loss sum.
       Each accumulator is lane-wide (B, 128); cross-lane reduce happens in JAX."""
    c = pl.program_id(0)
    t = pl.program_id(1)
    tiles_per_core = pl.num_programs(1)

    @pl.when(t == 0)
    def _():
        out_ref[...] = jnp.zeros_like(out_ref)

    x = pred_ref[...].astype(jnp.float32)   # logits      (B, rtile, 128)
    g = tgt_ref[...].astype(jnp.float32)    # target      (B, rtile, 128)
    m = mask_ref[...].astype(jnp.float32)   # region mask (B, rtile, 128)

    # Validity mask for the zero-padded tail of the flattened spatial axis.
    tile_idx = c * tiles_per_core + t
    row = jax.lax.broadcasted_iota(jnp.int32, (rtile, _LANES), 0)
    lane = jax.lax.broadcasted_iota(jnp.int32, (rtile, _LANES), 1)
    flat = (tile_idx * rtile + row) * _LANES + lane
    valid = (flat < hw).astype(jnp.float32)              # (rtile, 128)

    p = jax.nn.sigmoid(x)

    # --- MaskWeightedHeatmapLoss: (pred - target)^2 * (mask + lam*(1 - mask))
    diff = x - g
    w_m = m + lam * (1.0 - m)
    mask_term = diff * diff * w_m * valid

    # --- FocalLoss: w * (1 - pt)^gamma * BCE(sigmoid(pred) + eps, target)
    pe = p + eps
    bce = -(g * jnp.log(pe) + (1.0 - g) * jnp.log(1.0 - pe))
    pt = g * p + (1.0 - g) * (1.0 - p)
    w_f = alpha * g + (1.0 - alpha) * (1.0 - g)
    one_m_pt = 1.0 - pt
    if gamma == 2.0:
        mod = one_m_pt * one_m_pt
    else:
        mod = jnp.power(one_m_pt, gamma)
    focal_term = w_f * mod * bce * valid

    # --- IoULoss partial sums
    pv = p * valid
    gv = g * valid

    partials = (
        jnp.sum(pv * gv, axis=1),        # intersection        (B, 128)
        jnp.sum(pv, axis=1),             # sum sigmoid(pred)   (B, 128)
        jnp.sum(gv, axis=1),             # sum target          (B, 128)
        jnp.sum(mask_term, axis=1),      # weighted MSE sum    (B, 128)
        jnp.sum(focal_term, axis=1),     # focal sum           (B, 128)
    )
    for k, part in enumerate(partials):
        out_ref[0, k] += part


def combined_loss(pred, target, mask,
                  lambda_mask=1.0, lambda_focal=0.5, lambda_iou=0.5,
                  mask_weight=0.1, alpha=0.25, gamma=2.0,
                  focal_eps=1e-6, iou_smooth=1e-6):
    """pred, target, mask: [B, 1, H, W]. Returns (total_loss, dict of components).
       Component values are returned as JAX scalars (not Python floats)."""
    B, C, H, W = pred.shape
    assert C == 1, "CombinedLoss expects single-channel heatmaps"
    hw = H * W
    itemsize = jnp.dtype(pred.dtype).itemsize

    # Row-tile sizing: rows on the sublane axis (multiple of 8), ~2 MiB per
    # input block => 3 inputs x 2 pipeline buffers ~ 12 MiB of VMEM.
    target_block_bytes = 2 * 1024 * 1024
    rows_budget = max(8, target_block_bytes // (B * _LANES * itemsize))
    rows_budget = max(8, (rows_budget // 8) * 8)

    n_rows = -(-hw // _LANES)                       # 128-lane rows of real data
    rtile = max(8, min(rows_budget, _round_up(n_rows, 8)))

    n_tiles = -(-n_rows // rtile)
    tiles_per_core = -(-n_tiles // _NCORES)
    rows_pad = _NCORES * tiles_per_core * rtile
    hw_pad = rows_pad * _LANES

    def prep(x):
        x2 = x.reshape(B, hw)
        if hw_pad > hw:
            x2 = jnp.pad(x2, ((0, 0), (0, hw_pad - hw)))
        return x2.reshape(B, rows_pad, _LANES)

    pred3, tgt3, msk3 = prep(pred), prep(target), prep(mask)

    kernel = functools.partial(
        _combined_loss_kernel, hw=hw, rtile=rtile,
        alpha=alpha, gamma=gamma, eps=focal_eps, lam=mask_weight)

    in_spec = pl.BlockSpec((B, rtile, _LANES),
                           lambda c, t: (0, c * tiles_per_core + t, 0))
    out_spec = pl.BlockSpec((1, 5, B, _LANES), lambda c, t: (c, 0, 0, 0))

    cost = pl.CostEstimate(
        flops=int(40 * B * hw_pad),
        transcendentals=int(3 * B * hw_pad),
        bytes_accessed=int(3 * B * hw_pad * itemsize + _NCORES * 5 * B * _LANES * 4),
    )

    out = pl.pallas_call(
        kernel,
        out_shape=jax.ShapeDtypeStruct((_NCORES, 5, B, _LANES), jnp.float32),
        grid_spec=pltpu.PrefetchScalarGridSpec(
            num_scalar_prefetch=0,
            grid=(_NCORES, tiles_per_core),
            in_specs=[in_spec, in_spec, in_spec],
            out_specs=out_spec,
        ),
        compiler_params=pltpu.CompilerParams(
            dimension_semantics=("parallel", "arbitrary"),
            vmem_limit_bytes=32 * 1024 * 1024),
        cost_estimate=cost,
    )(pred3, tgt3, msk3)

    # Tiny epilogue in plain JAX: combine per-core partials and cross-lane sums.
    sums = out.sum(axis=(0, 3))                         # (5, B)
    inter, psum, gsum, mask_sums, focal_sums = sums     # each (B,)

    n_elems = B * hw
    mask_loss = mask_sums.sum() / n_elems
    focal_loss = focal_sums.sum() / n_elems
    union = psum + gsum - inter
    iou = (inter + iou_smooth) / (union + iou_smooth)
    iou_loss = 1.0 - jnp.mean(iou)

    total = lambda_mask * mask_loss + lambda_focal * focal_loss + lambda_iou * iou_loss
    # TODO(synk): PyTorch returns .item() Python floats in the dict; we return JAX scalars.
    return total, {"mask_loss": mask_loss, "focal_loss": focal_loss, "iou_loss": iou_loss}


def _reference_combined_loss(pred, target, mask,
                             lambda_mask=1.0, lambda_focal=0.5, lambda_iou=0.5,
                             mask_weight=0.1, alpha=0.25, gamma=2.0,
                             focal_eps=1e-6, iou_smooth=1e-6):
    pred = pred.astype(jnp.float32)
    target = target.astype(jnp.float32)
    mask = mask.astype(jnp.float32)
    # MaskWeightedHeatmapLoss (uses raw pred, no sigmoid)
    mse = (pred - target) ** 2
    w = mask + mask_weight * (1.0 - mask)
    mask_loss = jnp.mean(mse * w)
    # FocalLoss
    p = jax.nn.sigmoid(pred)
    bce = -(target * jnp.log(p + focal_eps)
            + (1.0 - target) * jnp.log(1.0 - (p + focal_eps)))
    pt = target * p + (1.0 - target) * (1.0 - p)
    wf = alpha * target + (1.0 - alpha) * (1.0 - target)
    focal_loss = jnp.mean(wf * (1.0 - pt) ** gamma * bce)
    # IoULoss
    inter = jnp.sum(p * target, axis=(2, 3))
    union = jnp.sum(p, axis=(2, 3)) + jnp.sum(target, axis=(2, 3)) - inter
    iou = (inter + iou_smooth) / (union + iou_smooth)
    iou_loss = 1.0 - jnp.mean(iou)
    total = lambda_mask * mask_loss + lambda_focal * focal_loss + lambda_iou * iou_loss
    return total, {"mask_loss": mask_loss, "focal_loss": focal_loss, "iou_loss": iou_loss}


if __name__ == "__main__":
    key = jax.random.PRNGKey(0)
    k1, k2, k3 = jax.random.split(key, 3)
    B, C, H, W = 2, 1, 16, 16
    pred = jax.random.normal(k1, (B, C, H, W), dtype=jnp.float32)
    target = jax.nn.sigmoid(jax.random.normal(k2, (B, C, H, W), dtype=jnp.float32))
    mask = (jax.random.uniform(k3, (B, C, H, W)) > 0.7).astype(jnp.float32)

    total, parts = combined_loss(pred, target, mask)
    total = jax.block_until_ready(total)

    ref_total, ref_parts = _reference_combined_loss(pred, target, mask)
    ref_total = jax.block_until_ready(ref_total)

    assert jnp.allclose(total, ref_total, atol=1e-5, rtol=1e-5), (total, ref_total)
    for name in ("mask_loss", "focal_loss", "iou_loss"):
        assert jnp.allclose(parts[name], ref_parts[name], atol=1e-5, rtol=1e-5), (
            name, parts[name], ref_parts[name])
    print("KERNEL_OK")
</pallas_src>

<mosaic_0001>
module attributes {stable_mosaic.version = 11 : i64} {
  func.func @_combined_loss_kernel(%arg0: i32, %arg1: i32, %arg2: memref<2x8x128xf32, #tpu.memory_space<vmem>>, %arg3: memref<2x8x128xf32, #tpu.memory_space<vmem>>, %arg4: memref<2x8x128xf32, #tpu.memory_space<vmem>>, %arg5: memref<1x5x2x128xf32, #tpu.memory_space<vmem>>) attributes {dimension_semantics = [#tpu.dimension_semantics<parallel>, #tpu.dimension_semantics<arbitrary>], iteration_bounds = array<i64: 2, 1>, scalar_prefetch = 0 : i64, scratch_operands = 0 : i64, tpu.core_type = #tpu.core_type<tc>, window_params = [{transform_indices = @transform_0, window_bounds = array<i64: 2, 8, 128>}, {transform_indices = @transform_1, window_bounds = array<i64: 2, 8, 128>}, {transform_indices = @transform_2, window_bounds = array<i64: 2, 8, 128>}, {transform_indices = @transform_3, window_bounds = array<i64: 1, 5, 2, 128>}]} {
    %c0_i32 = arith.constant 0 : i32
    %0 = arith.cmpi eq, %arg1, %c0_i32 : i32
    %1 = arith.extui %0 : i1 to i32
    %c0_i32_0 = arith.constant 0 : i32
    %2 = arith.cmpi ne, %1, %c0_i32_0 : i32
    scf.if %2 {
      %cst_62 = arith.constant 0.000000e+00 : f32
      %113 = vector.broadcast %cst_62 : f32 to vector<1x5x2x128xf32>
      %c0_63 = arith.constant 0 : index
      %c0_64 = arith.constant 0 : index
      %c0_65 = arith.constant 0 : index
      %c0_66 = arith.constant 0 : index
      %114 = vector.load %arg5[%c0_63, %c0_64, %c0_65, %c0_66] : memref<1x5x2x128xf32, #tpu.memory_space<vmem>>, vector<1x5x2x128xf32>
      tpu.vector_store %arg5[%c0_63, %c0_64, %c0_65, %c0_66], %113 {strides = array<i32>} : memref<1x5x2x128xf32, #tpu.memory_space<vmem>>, vector<1x5x2x128xf32>,
    } else {
    }
    %c0 = arith.constant 0 : index
    %c0_1 = arith.constant 0 : index
    %c0_2 = arith.constant 0 : index
    %3 = vector.load %arg2[%c0, %c0_1, %c0_2] : memref<2x8x128xf32, #tpu.memory_space<vmem>>, vector<2x8x128xf32>
    %c0_3 = arith.constant 0 : index
    %c0_4 = arith.constant 0 : index
    %c0_5 = arith.constant 0 : index
    %4 = vector.load %arg3[%c0_3, %c0_4, %c0_5] : memref<2x8x128xf32, #tpu.memory_space<vmem>>, vector<2x8x128xf32>
    %c0_6 = arith.constant 0 : index
    %c0_7 = arith.constant 0 : index
    %c0_8 = arith.constant 0 : index
    %5 = vector.load %arg4[%c0_6, %c0_7, %c0_8] : memref<2x8x128xf32, #tpu.memory_space<vmem>>, vector<2x8x128xf32>
    %c1_i32 = arith.constant 1 : i32
    %6 = arith.muli %arg0, %c1_i32 : i32
    %7 = arith.addi %6, %arg1 : i32
    %8 = tpu.iota {dimensions = array<i32: 0>} : vector<8x128xi32>
    %9 = tpu.iota {dimensions = array<i32: 1>} : vector<8x128xi32>
    %c8_i32 = arith.constant 8 : i32
    %10 = arith.muli %7, %c8_i32 : i32
    %11 = vector.broadcast %10 : i32 to vector<8x128xi32>
    %12 = arith.addi %11, %8 : vector<8x128xi32>
    %c128_i32 = arith.constant 128 : i32
    %13 = vector.broadcast %c128_i32 : i32 to vector<8x128xi32>
    %14 = arith.muli %12, %13 : vector<8x128xi32>
    %15 = arith.addi %14, %9 : vector<8x128xi32>
    %c256_i32 = arith.constant 256 : i32
    %16 = vector.broadcast %c256_i32 : i32 to vector<8x128xi32>
    %17 = arith.cmpi slt, %15, %16 : vector<8x128xi32>
    %18 = arith.extui %17 : vector<8x128xi1> to vector<8x128xi32>
    %19 = arith.sitofp %18 : vector<8x128xi32> to vector<8x128xf32>
    %20 = arith.negf %3 : vector<2x8x128xf32>
    %21 = math.exp %20 : vector<2x8x128xf32>
    %cst = arith.constant 1.000000e+00 : f32
    %22 = vector.broadcast %cst : f32 to vector<2x8x128xf32>
    %23 = arith.addf %22, %21 : vector<2x8x128xf32>
    %24 = arith.divf %22, %23 : vector<2x8x128xf32>
    %25 = arith.subf %3, %4 : vector<2x8x128xf32>
    %cst_9 = arith.constant 1.000000e+00 : f32
    %26 = vector.broadcast %cst_9 : f32 to vector<2x8x128xf32>
    %27 = arith.subf %26, %5 : vector<2x8x128xf32>
    %cst_10 = arith.constant 1.000000e-01 : f32
    %28 = vector.broadcast %cst_10 : f32 to vector<2x8x128xf32>
    %29 = arith.mulf %28, %27 : vector<2x8x128xf32>
    %30 = arith.addf %5, %29 : vector<2x8x128xf32>
    %31 = arith.mulf %25, %25 : vector<2x8x128xf32>
    %32 = arith.mulf %31, %30 : vector<2x8x128xf32>
    %33 = vector.shape_cast %19 : vector<8x128xf32> to vector<1x8x128xf32>
    %34 = vector.broadcast %33 : vector<1x8x128xf32> to vector<2x8x128xf32>
    %35 = arith.mulf %32, %34 : vector<2x8x128xf32>
    %cst_11 = arith.constant 9.99999997E-7 : f32
    %36 = vector.broadcast %cst_11 : f32 to vector<2x8x128xf32>
    %37 = arith.addf %24, %36 : vector<2x8x128xf32>
    %38 = math.log %37 : vector<2x8x128xf32>
    %39 = arith.mulf %4, %38 : vector<2x8x128xf32>
    %cst_12 = arith.constant 1.000000e+00 : f32
    %40 = vector.broadcast %cst_12 : f32 to vector<2x8x128xf32>
    %41 = arith.subf %40, %4 : vector<2x8x128xf32>
    %cst_13 = arith.constant 1.000000e+00 : f32
    %42 = vector.broadcast %cst_13 : f32 to vector<2x8x128xf32>
    %43 = arith.subf %42, %37 : vector<2x8x128xf32>
    %44 = math.log %43 : vector<2x8x128xf32>
    %45 = arith.mulf %41, %44 : vector<2x8x128xf32>
    %46 = arith.addf %39, %45 : vector<2x8x128xf32>
    %cst_14 = arith.constant 0.000000e+00 : f32
    %47 = vector.broadcast %cst_14 : f32 to vector<2x8x128xf32>
    %48 = arith.subf %47, %46 : vector<2x8x128xf32>
    %49 = arith.mulf %4, %24 : vector<2x8x128xf32>
    %cst_15 = arith.constant 1.000000e+00 : f32
    %50 = vector.broadcast %cst_15 : f32 to vector<2x8x128xf32>
    %51 = arith.subf %50, %4 : vector<2x8x128xf32>
    %cst_16 = arith.constant 1.000000e+00 : f32
    %52 = vector.broadcast %cst_16 : f32 to vector<2x8x128xf32>
    %53 = arith.subf %52, %24 : vector<2x8x128xf32>
    %54 = arith.mulf %51, %53 : vector<2x8x128xf32>
    %55 = arith.addf %49, %54 : vector<2x8x128xf32>
    %cst_17 = arith.constant 2.500000e-01 : f32
    %56 = vector.broadcast %cst_17 : f32 to vector<2x8x128xf32>
    %57 = arith.mulf %56, %4 : vector<2x8x128xf32>
    %cst_18 = arith.constant 1.000000e+00 : f32
    %58 = vector.broadcast %cst_18 : f32 to vector<2x8x128xf32>
    %59 = arith.subf %58, %4 : vector<2x8x128xf32>
    %cst_19 = arith.constant 7.500000e-01 : f32
    %60 = vector.broadcast %cst_19 : f32 to vector<2x8x128xf32>
    %61 = arith.mulf %60, %59 : vector<2x8x128xf32>
    %62 = arith.addf %57, %61 : vector<2x8x128xf32>
    %cst_20 = arith.constant 1.000000e+00 : f32
    %63 = vector.broadcast %cst_20 : f32 to vector<2x8x128xf32>
    %64 = arith.subf %63, %55 : vector<2x8x128xf32>
    %65 = arith.mulf %64, %64 : vector<2x8x128xf32>
    %66 = arith.mulf %62, %65 : vector<2x8x128xf32>
    %67 = arith.mulf %66, %48 : vector<2x8x128xf32>
    %68 = vector.shape_cast %19 : vector<8x128xf32> to vector<1x8x128xf32>
    %69 = vector.broadcast %68 : vector<1x8x128xf32> to vector<2x8x128xf32>
    %70 = arith.mulf %67, %69 : vector<2x8x128xf32>
    %71 = vector.shape_cast %19 : vector<8x128xf32> to vector<1x8x128xf32>
    %72 = vector.broadcast %71 : vector<1x8x128xf32> to vector<2x8x128xf32>
    %73 = arith.mulf %24, %72 : vector<2x8x128xf32>
    %74 = vector.shape_cast %19 : vector<8x128xf32> to vector<1x8x128xf32>
    %75 = vector.broadcast %74 : vector<1x8x128xf32> to vector<2x8x128xf32>
    %76 = arith.mulf %4, %75 : vector<2x8x128xf32>
    %77 = arith.mulf %73, %76 : vector<2x8x128xf32>
    %cst_21 = arith.constant dense<0.000000e+00> : vector<2x128xf32>
    %78 = vector.multi_reduction <add>, %77, %cst_21 [1] : vector<2x8x128xf32> to vector<2x128xf32>
    %cst_22 = arith.constant dense<0.000000e+00> : vector<2x128xf32>
    %79 = vector.multi_reduction <add>, %73, %cst_22 [1] : vector<2x8x128xf32> to vector<2x128xf32>
    %cst_23 = arith.constant dense<0.000000e+00> : vector<2x128xf32>
    %80 = vector.multi_reduction <add>, %76, %cst_23 [1] : vector<2x8x128xf32> to vector<2x128xf32>
    %cst_24 = arith.constant dense<0.000000e+00> : vector<2x128xf32>
    %81 = vector.multi_reduction <add>, %35, %cst_24 [1] : vector<2x8x128xf32> to vector<2x128xf32>
    %cst_25 = arith.constant dense<0.000000e+00> : vector<2x128xf32>
    %82 = vector.multi_reduction <add>, %70, %cst_25 [1] : vector<2x8x128xf32> to vector<2x128xf32>
    %c0_26 = arith.constant 0 : index
    %c0_27 = arith.constant 0 : index
    %c0_28 = arith.constant 0 : index
    %c0_29 = arith.constant 0 : index
    %83 = vector.load %arg5[%c0_26, %c0_27, %c0_28, %c0_29] : memref<1x5x2x128xf32, #tpu.memory_space<vmem>>, vector<1x1x2x128xf32>
    %84 = vector.shape_cast %83 : vector<1x1x2x128xf32> to vector<2x128xf32>
    %85 = arith.addf %84, %78 : vector<2x128xf32>
    %c0_30 = arith.constant 0 : index
    %c0_31 = arith.constant 0 : index
    %c0_32 = arith.constant 0 : index
    %c0_33 = arith.constant 0 : index
    %86 = vector.load %arg5[%c0_30, %c0_31, %c0_32, %c0_33] : memref<1x5x2x128xf32, #tpu.memory_space<vmem>>, vector<1x1x2x128xf32>
    %87 = vector.shape_cast %86 : vector<1x1x2x128xf32> to vector<2x128xf32>
    %88 = vector.shape_cast %85 : vector<2x128xf32> to vector<1x1x2x128xf32>
    tpu.vector_store %arg5[%c0_30, %c0_31, %c0_32, %c0_33], %88 {strides = array<i32>} : memref<1x5x2x128xf32, #tpu.memory_space<vmem>>, vector<1x1x2x128xf32>,
    %c0_34 = arith.constant 0 : index
    %c1 = arith.constant 1 : index
    %c0_35 = arith.constant 0 : index
    %c0_36 = arith.constant 0 : index
    %89 = vector.load %arg5[%c0_34, %c1, %c0_35, %c0_36] : memref<1x5x2x128xf32, #tpu.memory_space<vmem>>, vector<1x1x2x128xf32>
    %90 = vector.shape_cast %89 : vector<1x1x2x128xf32> to vector<2x128xf32>
    %91 = arith.addf %90, %79 : vector<2x128xf32>
    %c0_37 = arith.constant 0 : index
    %c1_38 = arith.constant 1 : index
    %c0_39 = arith.constant 0 : index
    %c0_40 = arith.constant 0 : index
    %92 = vector.load %arg5[%c0_37, %c1_38, %c0_39, %c0_40] : memref<1x5x2x128xf32, #tpu.memory_space<vmem>>, vector<1x1x2x128xf32>
    %93 = vector.shape_cast %92 : vector<1x1x2x128xf32> to vector<2x128xf32>
    %94 = vector.shape_cast %91 : vector<2x128xf32> to vector<1x1x2x128xf32>
    tpu.vector_store %arg5[%c0_37, %c1_38, %c0_39, %c0_40], %94 {strides = array<i32>} : memref<1x5x2x128xf32, #tpu.memory_space<vmem>>, vector<1x1x2x128xf32>,
    %c0_41 = arith.constant 0 : index
    %c2 = arith.constant 2 : index
    %c0_42 = arith.constant 0 : index
    %c0_43 = arith.constant 0 : index
    %95 = vector.load %arg5[%c0_41, %c2, %c0_42, %c0_43] : memref<1x5x2x128xf32, #tpu.memory_space<vmem>>, vector<1x1x2x128xf32>
    %96 = vector.shape_cast %95 : vector<1x1x2x128xf32> to vector<2x128xf32>
    %97 = arith.addf %96, %80 : vector<2x128xf32>
    %c0_44 = arith.constant 0 : index
    %c2_45 = arith.constant 2 : index
    %c0_46 = arith.constant 0 : index
    %c0_47 = arith.constant 0 : index
    %98 = vector.load %arg5[%c0_44, %c2_45, %c0_46, %c0_47] : memref<1x5x2x128xf32, #tpu.memory_space<vmem>>, vector<1x1x2x128xf32>
    %99 = vector.shape_cast %98 : vector<1x1x2x128xf32> to vector<2x128xf32>
    %100 = vector.shape_cast %97 : vector<2x128xf32> to vector<1x1x2x128xf32>
    tpu.vector_store %arg5[%c0_44, %c2_45, %c0_46, %c0_47], %100 {strides = array<i32>} : memref<1x5x2x128xf32, #tpu.memory_space<vmem>>, vector<1x1x2x128xf32>,
    %c0_48 = arith.constant 0 : index
    %c3 = arith.constant 3 : index
    %c0_49 = arith.constant 0 : index
    %c0_50 = arith.constant 0 : index
    %101 = vector.load %arg5[%c0_48, %c3, %c0_49, %c0_50] : memref<1x5x2x128xf32, #tpu.memory_space<vmem>>, vector<1x1x2x128xf32>
    %102 = vector.shape_cast %101 : vector<1x1x2x128xf32> to vector<2x128xf32>
    %103 = arith.addf %102, %81 : vector<2x128xf32>
    %c0_51 = arith.constant 0 : index
    %c3_52 = arith.constant 3 : index
    %c0_53 = arith.constant 0 : index
    %c0_54 = arith.constant 0 : index
    %104 = vector.load %arg5[%c0_51, %c3_52, %c0_53, %c0_54] : memref<1x5x2x128xf32, #tpu.memory_space<vmem>>, vector<1x1x2x128xf32>
    %105 = vector.shape_cast %104 : vector<1x1x2x128xf32> to vector<2x128xf32>
    %106 = vector.shape_cast %103 : vector<2x128xf32> to vector<1x1x2x128xf32>
    tpu.vector_store %arg5[%c0_51, %c3_52, %c0_53, %c0_54], %106 {strides = array<i32>} : memref<1x5x2x128xf32, #tpu.memory_space<vmem>>, vector<1x1x2x128xf32>,
    %c0_55 = arith.constant 0 : index
    %c4 = arith.constant 4 : index
    %c0_56 = arith.constant 0 : index
    %c0_57 = arith.constant 0 : index
    %107 = vector.load %arg5[%c0_55, %c4, %c0_56, %c0_57] : memref<1x5x2x128xf32, #tpu.memory_space<vmem>>, vector<1x1x2x128xf32>
    %108 = vector.shape_cast %107 : vector<1x1x2x128xf32> to vector<2x128xf32>
    %109 = arith.addf %108, %82 : vector<2x128xf32>
    %c0_58 = arith.constant 0 : index
    %c4_59 = arith.constant 4 : index
    %c0_60 = arith.constant 0 : index
    %c0_61 = arith.constant 0 : index
    %110 = vector.load %arg5[%c0_58, %c4_59, %c0_60, %c0_61] : memref<1x5x2x128xf32, #tpu.memory_space<vmem>>, vector<1x1x2x128xf32>
    %111 = vector.shape_cast %110 : vector<1x1x2x128xf32> to vector<2x128xf32>
    %112 = vector.shape_cast %109 : vector<2x128xf32> to vector<1x1x2x128xf32>
    tpu.vector_store %arg5[%c0_58, %c4_59, %c0_60, %c0_61], %112 {strides = array<i32>} : memref<1x5x2x128xf32, #tpu.memory_space<vmem>>, vector<1x1x2x128xf32>,
    return
  }
  func.func @transform_0(%arg0: i32, %arg1: i32) -> (i32, i32, i32) {
    %c1_i32 = arith.constant 1 : i32
    %0 = arith.muli %arg0, %c1_i32 : i32
    %1 = arith.addi %0, %arg1 : i32
    %c0_i32 = arith.constant 0 : i32
    %c0_i32_0 = arith.constant 0 : i32
    %c0_i32_1 = arith.constant 0 : i32
    return %c0_i32, %1, %c0_i32_0 : i32, i32, i32
  }
  func.func @transform_1(%arg0: i32, %arg1: i32) -> (i32, i32, i32) {
    %c1_i32 = arith.constant 1 : i32
    %0 = arith.muli %arg0, %c1_i32 : i32
    %1 = arith.addi %0, %arg1 : i32
    %c0_i32 = arith.constant 0 : i32
    %c0_i32_0 = arith.constant 0 : i32
    %c0_i32_1 = arith.constant 0 : i32
    return %c0_i32, %1, %c0_i32_0 : i32, i32, i32
  }
  func.func @transform_2(%arg0: i32, %arg1: i32) -> (i32, i32, i32) {
    %c1_i32 = arith.constant 1 : i32
    %0 = arith.muli %arg0, %c1_i32 : i32
    %1 = arith.addi %0, %arg1 : i32
    %c0_i32 = arith.constant 0 : i32
    %c0_i32_0 = arith.constant 0 : i32
    %c0_i32_1 = arith.constant 0 : i32
    return %c0_i32, %1, %c0_i32_0 : i32, i32, i32
  }
  func.func @transform_3(%arg0: i32, %arg1: i32) -> (i32, i32, i32, i32) {
    %c0_i32 = arith.constant 0 : i32
    %c0_i32_0 = arith.constant 0 : i32
    %c0_i32_1 = arith.constant 0 : i32
    %c0_i32_2 = arith.constant 0 : i32
    return %arg0, %c0_i32, %c0_i32_0, %c0_i32_1 : i32, i32, i32, i32
  }
}

</mosaic_0001>

<llo_original>
// kernel: tpu_custom_call.1
$region0: #{tpu_custom_call.1}
  #allocation0 [shape = 'u32[]', space=smem, size = 0x4, offset = 0x4, fixed_abs, tag = 'smem constant byte address 0x4 - core index']
  #allocation1 [shape = 'u32[144,128]{1,0:T(1,128)}', space=vmem, size = 0x12000, scoped, tag = 'internal scratch']
  %s0 = inlined_call_operand.hbm [shape: f32[2,16,128], index: 0, kind: input, shape index: {}]
  %s1 = inlined_call_operand.hbm [shape: f32[2,16,128], index: 1, kind: input, shape index: {}]
  %s2 = inlined_call_operand.hbm [shape: f32[2,16,128], index: 2, kind: input, shape index: {}]
  %s3 = inlined_call_operand.hbm [shape: f32[2,5,2,128], index: 3, kind: output, shape index: {}]
  %s4 = sld [smem:[#allocation0]]
  $region61: #{tpu_custom_call.1} parent=0
    _
  %s6 = ssub.s32 1, %s4
  %s7 = scalar_select 0, %s6, %s4
  $region1: #{tpu_custom_call.1} parent=0
    #allocation2 [shape = 'u8[16384]{0}', space=vmem, size = 0x4000, scoped, tag = 'input window, operand 0']
    #allocation3 [shape = 's32[2]{0}', space=sflag, size = 0x8, scoped, tag = 'scoped memory for tpu_custom_call.1']
    #allocation4 [shape = 's32[2]{0}', space=sflag, size = 0x8, scoped, tag = 'scoped memory for tpu_custom_call.1']
    #allocation5 [shape = 'u8[16384]{0}', space=vmem, size = 0x4000, scoped, tag = 'input window, operand 1']
    #allocation6 [shape = 's32[2]{0}', space=sflag, size = 0x8, scoped, tag = 'scoped memory for tpu_custom_call.1']
    #allocation7 [shape = 'u8[16384]{0}', space=vmem, size = 0x4000, scoped, tag = 'input window, operand 2']
    #allocation8 [shape = 'u8[10240]{0}', space=vmem, size = 0x2800, scoped, tag = 'output window, operand 0']
    %8 = vsyncpa [#allocation3], 0
    %s9 = scalar_lea.sflag [#allocation3], 1
    %10 = vsyncpa %s9, 0
    %11 = vsyncpa [#allocation6], 0
    %s12 = scalar_lea.sflag [#allocation6], 1
    %13 = vsyncpa %s12, 0
    %14 = vsyncpa [#allocation4], 0
    %s15 = scalar_lea.sflag [#allocation4], 1
    %16 = vsyncpa %s15, 0
    loop: start=0, step=1, limit=4
    $region2: #{tpu_custom_call.1} parent=1 // loop_pre_header
      _
    $region3: #{tpu_custom_call.1} parent=1 // loop_header
      %s18 = sphi 0, %s22
      %p19 = scmp.ge.s32.totalorder %s18, 4
      %s25 = sphi 0, %s37
      %s26 = sphi 0, %s33
      %s27 = sphi 0, %s25
      %s28 = sphi 0, %s26
      %s29 = sphi 0, %s27
      %s30 = sphi 0, %s28
      %s42 = sphi 0, %s44
      %s45 = sphi 0, %s42
      %s46 = sphi 0, %s45
      %s62 = sphi 0, %s46
      %s70 = sphi 0, %s72
      %s73 = sphi 0, %s70
      %s74 = sphi 0, %s73
      %s90 = sphi 0, %s74
      %s98 = sphi 0, %s100
      %s101 = sphi 0, %s98
      %s102 = sphi 0, %s101
      %s118 = sphi 0, %s102
      %s124 = sphi 0, %s126
      %s127 = sphi 0, %s124
      %s128 = sphi 0, %s127
      %s144 = sphi 0, %s128
    $region4: #{tpu_custom_call.1} parent=1 // loop_header_branch
      %21 = sbr.rel (%p19) target = $region8
    $region5: #{tpu_custom_call.1} parent=1 // loop_body
      %s23 = ssub.s32 %s18, 1
      %s24 = ssub.s32 %s18, 2
      %s31 = sadd.s32 1, %s26
      %p32 = scmp.ge.s32.totalorder %s31, 1
      %s33 = scalar_select %p32, 0, %s31
      %s34 = sadd.s32 1, %s25
      %s35 = scalar_select %p32, %s34, %s25
      %p36 = scmp.ge.s32.totalorder %s35, 2
      %s37 = scalar_select %p36, 0, %s35
      %s38 = sadd.s32 %s25, %s26
      %s39 = sadd.s32 %s37, %s33
      %s40 = ssub.s32 %s38, %s39
      %p41 = scmp.eq.s32.totalorder %s40, 0
      %s43 = sadd.s32 %s42, 1
      %s44 = scalar_select %p41, %s42, %s43
      %p47 = pneg %p41
      %p48 = scmp.eq.s32.totalorder %s18, 1
      %p49 = por %p47, %p48
      %p50 = scmp.ne.s32.totalorder %s42, %s45
      %p51 = scmp.eq.s32.totalorder %s18, 0
      %p52 = por %p50, %p51
      %p53 = scmp.ne.s32.totalorder %s42, %s45
      %p54 = scmp.eq.s32.totalorder %s23, 1
      %p55 = por %p53, %p54
      %p56 = scmp.ne.s32.totalorder %s45, %s46
      %p57 = scmp.eq.s32.totalorder %s23, 0
      %p58 = por %p56, %p57
      %p59 = scmp.ne.s32.totalorder %s45, %s46
      %p60 = scmp.eq.s32.totalorder %s24, 1
      %p61 = por %p59, %p60
      %p63 = scmp.ne.s32.totalorder %s46, %s62
      %p64 = scmp.eq.s32.totalorder %s24, 0
      %p65 = por %p63, %p64
      %s66 = sadd.s32 %s25, %s26
      %s67 = sadd.s32 %s37, %s33
      %s68 = ssub.s32 %s66, %s67
      %p69 = scmp.eq.s32.totalorder %s68, 0
      %s71 = sadd.s32 %s70, 1
      %s72 = scalar_select %p69, %s70, %s71
      %p75 = pneg %p69
      %p76 = scmp.eq.s32.totalorder %s18, 1
      %p77 = por %p75, %p76
      %p78 = scmp.ne.s32.totalorder %s70, %s73
      %p79 = scmp.eq.s32.totalorder %s18, 0
      %p80 = por %p78, %p79
      %p81 = scmp.ne.s32.totalorder %s70, %s73
      %p82 = scmp.eq.s32.totalorder %s23, 1
      %p83 = por %p81, %p82
      %p84 = scmp.ne.s32.totalorder %s73, %s74
      %p85 = scmp.eq.s32.totalorder %s23, 0
      %p86 = por %p84, %p85
      %p87 = scmp.ne.s32.totalorder %s73, %s74
      %p88 = scmp.eq.s32.totalorder %s24, 1
      %p89 = por %p87, %p88
      %p91 = scmp.ne.s32.totalorder %s74, %s90
      %p92 = scmp.eq.s32.totalorder %s24, 0
      %p93 = por %p91, %p92
      %s94 = sadd.s32 %s25, %s26
      %s95 = sadd.s32 %s37, %s33
      %s96 = ssub.s32 %s94, %s95
      %p97 = scmp.eq.s32.totalorder %s96, 0
      %s99 = sadd.s32 %s98, 1
      %s100 = scalar_select %p97, %s98, %s99
      %p103 = pneg %p97
      %p104 = scmp.eq.s32.totalorder %s18, 1
      %p105 = por %p103, %p104
      %p106 = scmp.ne.s32.totalorder %s98, %s101
      %p107 = scmp.eq.s32.totalorder %s18, 0
      %p108 = por %p106, %p107
      %p109 = scmp.ne.s32.totalorder %s98, %s101
      %p110 = scmp.eq.s32.totalorder %s23, 1
      %p111 = por %p109, %p110
      %p112 = scmp.ne.s32.totalorder %s101, %s102
      %p113 = scmp.eq.s32.totalorder %s23, 0
      %p114 = por %p112, %p113
      %p115 = scmp.ne.s32.totalorder %s101, %s102
      %p116 = scmp.eq.s32.totalorder %s24, 1
      %p117 = por %p115, %p116
      %p119 = scmp.ne.s32.totalorder %s102, %s118
      %p120 = scmp.eq.s32.totalorder %s24, 0
      %p121 = por %p119, %p120
      %s122 = ssub.s32 %s25, %s37
      %p123 = scmp.eq.s32.totalorder %s122, 0
      %s125 = sadd.s32 %s124, 1
      %s126 = scalar_select %p123, %s124, %s125
      %p129 = pneg %p123
      %p130 = scmp.eq.s32.totalorder %s18, 1
      %p131 = por %p129, %p130
      %p132 = scmp.ne.s32.totalorder %s124, %s127
      %p133 = scmp.eq.s32.totalorder %s18, 0
      %p134 = por %p132, %p133
      %p135 = scmp.ne.s32.totalorder %s124, %s127
      %p136 = scmp.eq.s32.totalorder %s23, 1
      %p137 = por %p135, %p136
      %p138 = scmp.ne.s32.totalorder %s127, %s128
      %p139 = scmp.eq.s32.totalorder %s23, 0
      %p140 = por %p138, %p139
      %p141 = scmp.ne.s32.totalorder %s127, %s128
      %p142 = scmp.eq.s32.totalorder %s24, 1
      %p143 = por %p141, %p142
      %p145 = scmp.ne.s32.totalorder %s128, %s144
      %p146 = scmp.eq.s32.totalorder %s24, 0
      %p147 = por %p145, %p146
      %p148 = scmp.le.s32.totalorder 1, %s18
      %p149 = scmp.lt.s32.totalorder %s18, 3
      %p150 = pnand %p148, %p149
      %p151 = pneg %p150
      // Predicated region
      $region9: #{tpu_custom_call.1} parent=5 // pred_check
        _
      $region10: #{tpu_custom_call.1} parent=5 // pred_check_branch
        %153 = sbr.rel (%p150) target = $region12
      $region11: #{tpu_custom_call.1} parent=5 // pred_region
        %s154 = ssub.s32 %s18, 1
      $region12: #{tpu_custom_call.1} parent=5 // pred_fallthru
        _
      %p155 = scmp.lt.s32.totalorder %s18, 2
      // Predicated region
      $region13: #{tpu_custom_call.1} parent=5 // pred_check
        %p156 = pneg %p155
      $region14: #{tpu_custom_call.1} parent=5 // pred_check_branch
        %158 = sbr.rel (%p156) target = $region16
      $region15: #{tpu_custom_call.1} parent=5 // pred_region
        // Predicated region
        $region17: #{tpu_custom_call.1} parent=15 // pred_check
          %p159 = pneg %p52
        $region18: #{tpu_custom_call.1} parent=15 // pred_check_branch
          %161 = sbr.rel (%p159) target = $region20
        $region19: #{tpu_custom_call.1} parent=15 // pred_region
          %s162 = sand.u32 %s42, 1
          %s163 = scalar_lea.sflag [#allocation3], %s162
          %s164 = sand.u32 %s42, 1
          %s165 = smul.addr %s164, 16
          %s166 = scalar_lea.vmem [#allocation2], %s165
          %s167 = sadd.s32 %s25, %s26
          %s169 = ssub.s32 256, 256
          %170 = vsyncadd %s163, %s169
          %s171 = smul.addr %s167, 128
          %s172 = scalar_lea.hbm %s0, %s171
          %s173 = sshll.u32 %s166, 4
          %s174 = int_to_ptr.vmem [resolvable:$true] %s173
          %179 = dma.hbm_to_vmem [thread:$0]  %s172, 256, %s174, %s163, 256, 128, 8
        $region20: #{tpu_custom_call.1} parent=15 // pred_fallthru
          _
        // Predicated region
        $region21: #{tpu_custom_call.1} parent=15 // pred_check
          %p180 = pneg %p80
        $region22: #{tpu_custom_call.1} parent=15 // pred_check_branch
          %182 = sbr.rel (%p180) target = $region24
        $region23: #{tpu_custom_call.1} parent=15 // pred_region
          %s183 = sand.u32 %s18, 1
          %s184 = scalar_lea.sflag [#allocation6], %s183
          %s185 = sand.u32 %s70, 1
          %s186 = smul.addr %s185, 16
          %s187 = scalar_lea.vmem [#allocation5], %s186
          %s188 = sadd.s32 %s25, %s26
          %s190 = ssub.s32 256, 256
          %191 = vsyncadd %s184, %s190
          %s192 = smul.addr %s188, 128
          %s193 = scalar_lea.hbm %s1, %s192
          %s194 = sshll.u32 %s187, 4
          %s195 = int_to_ptr.vmem [resolvable:$true] %s194
          %200 = dma.hbm_to_vmem [thread:$0]  %s193, 256, %s195, %s184, 256, 128, 8
        $region24: #{tpu_custom_call.1} parent=15 // pred_fallthru
          _
        // Predicated region
        $region25: #{tpu_custom_call.1} parent=15 // pred_check
          %p201 = pneg %p108
        $region26: #{tpu_custom_call.1} parent=15 // pred_check_branch
          %203 = sbr.rel (%p201) target = $region28
        $region27: #{tpu_custom_call.1} parent=15 // pred_region
          %s204 = sand.u32 %s18, 1
          %s205 = scalar_lea.sflag [#allocation6], %s204
          %s206 = sand.u32 %s98, 1
          %s207 = smul.addr %s206, 16
          %s208 = scalar_lea.vmem [#allocation7], %s207
          %s209 = sadd.s32 %s25, %s26
          %s211 = ssub.s32 256, 256
          %212 = vsyncadd %s205, %s211
          %s213 = smul.addr %s209, 128
          %s214 = scalar_lea.hbm %s2, %s213
          %s215 = sshll.u32 %s208, 4
          %s216 = int_to_ptr.vmem [resolvable:$true] %s215
          %221 = dma.hbm_to_vmem [thread:$0]  %s214, 256, %s216, %s205, 256, 128, 8
        $region28: #{tpu_custom_call.1} parent=15 // pred_fallthru
          _
      $region16: #{tpu_custom_call.1} parent=5 // pred_fallthru
        _
      %p222 = scmp.le.s32.totalorder 1, %s18
      %p223 = scmp.lt.s32.totalorder %s18, 3
      %p224 = pnand %p222, %p223
      %p225 = pneg %p224
      // Predicated region
      $region29: #{tpu_custom_call.1} parent=5 // pred_check
        _
      $region30: #{tpu_custom_call.1} parent=5 // pred_check_branch
        %227 = sbr.rel (%p224) target = $region32
      $region31: #{tpu_custom_call.1} parent=5 // pred_region
        %s228 = ssub.s32 %s18, 1
        %s229 = sand.u32 %s45, 1
        %s230 = scalar_lea.sflag [#allocation3], %s229
        %s231 = sand.u32 %s45, 1
        %s232 = smul.addr %s231, 16
        %s233 = scalar_lea.vmem [#allocation2], %s232
        // Predicated region
        $region33: #{tpu_custom_call.1} parent=31 // pred_check
          %p234 = pneg %p58
        $region34: #{tpu_custom_call.1} parent=31 // pred_check_branch
          %236 = sbr.rel (%p234) target = $region36
        $region35: #{tpu_custom_call.1} parent=31 // pred_region
          %237 = dma.done %s230, 256
        $region36: #{tpu_custom_call.1} parent=31 // pred_fallthru
          _
        %s238 = sand.u32 %s23, 1
        %s239 = scalar_lea.sflag [#allocation6], %s238
        %s240 = sand.u32 %s73, 1
        %s241 = smul.addr %s240, 16
        %s242 = scalar_lea.vmem [#allocation5], %s241
        // Predicated region
        $region37: #{tpu_custom_call.1} parent=31 // pred_check
          %p243 = pneg %p86
        $region38: #{tpu_custom_call.1} parent=31 // pred_check_branch
          %245 = sbr.rel (%p243) target = $region40
        $region39: #{tpu_custom_call.1} parent=31 // pred_region
          %246 = dma.done %s239, 256
        $region40: #{tpu_custom_call.1} parent=31 // pred_fallthru
          _
        %s247 = sand.u32 %s23, 1
        %s248 = scalar_lea.sflag [#allocation6], %s247
        %s249 = sand.u32 %s101, 1
        %s250 = smul.addr %s249, 16
        %s251 = scalar_lea.vmem [#allocation7], %s250
        // Predicated region
        $region41: #{tpu_custom_call.1} parent=31 // pred_check
          %p252 = pneg %p114
        $region42: #{tpu_custom_call.1} parent=31 // pred_check_branch
          %254 = sbr.rel (%p252) target = $region44
        $region43: #{tpu_custom_call.1} parent=31 // pred_region
          %255 = dma.done %s248, 256
        $region44: #{tpu_custom_call.1} parent=31 // pred_fallthru
          _
        %s256 = sand.u32 %s45, 1
        %s257 = scalar_lea.sflag [#allocation3], %s256
        %s258 = sand.u32 %s45, 1
        %s259 = smul.addr %s258, 16
        %s260 = scalar_lea.vmem [#allocation2], %s259
        %p261 = pneg %p58
        %p262 = pneg %p55
        %s263 = sand.u32 %s23, 1
        %s264 = scalar_lea.sflag [#allocation6], %s263
        %s265 = sand.u32 %s73, 1
        %s266 = smul.addr %s265, 16
        %s267 = scalar_lea.vmem [#allocation5], %s266
        %p268 = pneg %p86
        %p269 = pneg %p83
        %s270 = sand.u32 %s23, 1
        %s271 = scalar_lea.sflag [#allocation6], %s270
        %s272 = sand.u32 %s101, 1
        %s273 = smul.addr %s272, 16
        %s274 = scalar_lea.vmem [#allocation7], %s273
        %p275 = pneg %p114
        %p276 = pneg %p111
        %p277 = pneg %p140
        %p278 = pneg %p137
        %s279 = sand.u32 %s127, 1
        %s280 = scalar_lea.sflag [#allocation4], %s279
        %s281 = sand.u32 %s127, 1
        %s282 = smul.addr %s281, 10
        %s283 = scalar_lea.vmem [#allocation8], %s282
        %s284 = sadd.s32 %s27, %s28
        %s285 = sadd.s32 %s27, %s28
        %s286 = sadd.s32 %s27, %s28
        %p287 = scmp.eq.s32.totalorder %s28, 0
        // Predicated region
        $region45: #{tpu_custom_call.1} parent=31 // pred_check
          %p288 = pneg %p287
        $region46: #{tpu_custom_call.1} parent=31 // pred_check_branch
          %290 = sbr.rel (%p288) target = $region48
        $region47: #{tpu_custom_call.1} parent=31 // pred_region
          %291 = vst [vmem:[%s283] sm:$0x3] 0.0
          %292 = vst [vmem:[%s283 + $0x2] sm:$0x3] 0.0
          %293 = vst [vmem:[%s283 + $0x4] sm:$0x3] 0.0
          %294 = vst [vmem:[%s283 + $0x6] sm:$0x3] 0.0
          %295 = vst [vmem:[%s283 + $0x8] sm:$0x3] 0.0
        $region48: #{tpu_custom_call.1} parent=31 // pred_fallthru
          _
        %v296 = vld [vmem:[%s233] sm:$0xff]
        %v297 = vld [vmem:[%s233 + $0x8] sm:$0xff]
        %v298 = vld [vmem:[%s242] sm:$0xff]
        %v299 = vld [vmem:[%s242 + $0x8] sm:$0xff]
        %v300 = vld [vmem:[%s251] sm:$0xff]
        %v301 = vld [vmem:[%s251 + $0x8] sm:$0xff]
        %s302 = sadd.s32 %s27, %s28
        %v303 = vlaneseq
        %v304 = vshrl.u32 %v303, 7
        %v305 = vlaneseq
        %v306 = vand.u32 %v305, 127
        %s307 = smul.u32 %s302, 8
        %v308 = vstv %s307
        %v309 = vadd.s32 %v308, %v304
        %v310 = vmul.u32 %v309, 128
        %v311 = vadd.s32 %v310, %v306
        %vm312 = vcmp.lt.s32.totalorder %v311, 256
        %v313 = vsel %vm312, 1, 0
        %v314 = vcvt.s32.f32 %v313
        %v315 = vxor.u32 %v296, 2147483648
        %v316 = vxor.u32 %v297, 2147483648
        %v317 = vmul.f32 %v315, 1.442695
        %v318 = vpow.pop %v317
        %v319 = vmul.f32 %v316, 1.442695
        %v320 = vpow.pop %v319
        %v321 = vadd.f32 %v318, 1.0
        %v322 = vadd.f32 %v320, 1.0
        %v323 = vrcp.pop %v321
        %v324 = vmul.f32 1.0, %v323
        %v325 = vrcp.pop %v322
        %v326 = vmul.f32 1.0, %v325
        %v327 = vsub.f32 %v296, %v298
        %v328 = vsub.f32 %v297, %v299
        %v329 = vsub.f32 1.0, %v300
        %v330 = vsub.f32 1.0, %v301
        %v331 = vmul.f32 %v329, 0.1
        %v332 = vmul.f32 %v330, 0.1
        %v333 = vadd.f32 %v300, %v331
        %v334 = vadd.f32 %v301, %v332
        %v335 = vmul.f32 %v327, %v327
        %v336 = vmul.f32 %v328, %v328
        %v337 = vmul.f32 %v335, %v333
        %v338 = vmul.f32 %v336, %v334
        %v339 = vmul.f32 %v337, %v314
        %v340 = vmul.f32 %v338, %v314
        %v341 = vadd.f32 %v324, 1e-06
        %v342 = vadd.f32 %v326, 1e-06
        %v343 = vlog2.pop %v341
        %v344 = vmul.f32 %v343, 0.6931472
        %v345 = vlog2.pop %v342
        %v346 = vmul.f32 %v345, 0.6931472
        %v347 = vmul.f32 %v298, %v344
        %v348 = vmul.f32 %v299, %v346
        %v349 = vsub.f32 1.0, %v298
        %v350 = vsub.f32 1.0, %v299
        %v351 = vsub.f32 1.0, %v341
        %v352 = vsub.f32 1.0, %v342
        %v353 = vlog2.pop %v351
        %v354 = vmul.f32 %v353, 0.6931472
        %v355 = vlog2.pop %v352
        %v356 = vmul.f32 %v355, 0.6931472
        %v357 = vmul.f32 %v349, %v354
        %v358 = vmul.f32 %v350, %v356
        %v359 = vadd.f32 %v347, %v357
        %v360 = vadd.f32 %v348, %v358
        %v361 = vsub.f32 0.0, %v359
        %v362 = vsub.f32 0.0, %v360
        %v363 = vmul.f32 %v298, %v324
        %v364 = vmul.f32 %v299, %v326
        %v365 = vsub.f32 1.0, %v324
        %v366 = vsub.f32 1.0, %v326
        %v367 = vmul.f32 %v349, %v365
        %v368 = vmul.f32 %v350, %v366
        %v369 = vadd.f32 %v363, %v367
        %v370 = vadd.f32 %v364, %v368
        %v371 = vmul.f32 %v298, 0.25
        %v372 = vmul.f32 %v299, 0.25
        %v373 = vmul.f32 %v349, 0.75
        %v374 = vmul.f32 %v350, 0.75
        %v375 = vadd.f32 %v371, %v373
        %v376 = vadd.f32 %v372, %v374
        %v377 = vsub.f32 1.0, %v369
        %v378 = vsub.f32 1.0, %v370
        %v379 = vmul.f32 %v377, %v377
        %v380 = vmul.f32 %v378, %v378
        %v381 = vmul.f32 %v375, %v379
        %v382 = vmul.f32 %v376, %v380
        %v383 = vmul.f32 %v381, %v361
        %v384 = vmul.f32 %v382, %v362
        %v385 = vmul.f32 %v383, %v314
        %v386 = vmul.f32 %v384, %v314
        %v387 = vmul.f32 %v324, %v314
        %v388 = vmul.f32 %v326, %v314
        %v389 = vmul.f32 %v298, %v314
        %v390 = vmul.f32 %v299, %v314
        %v391 = vmul.f32 %v387, %v389
        %v392 = vmul.f32 %v388, %v390
        %v393 = vrot.slane %v391, 4
        %v394 = vadd.f32 %v391, %v393
        %v395 = vrot.slane %v394, 2
        %v396 = vadd.f32 %v394, %v395
        %v397 = vrot.slane %v396, 1
        %v398 = vadd.f32 %v396, %v397
        %v399 = vrot.slane %v392, 4
        %v400 = vadd.f32 %v392, %v399
        %v401 = vrot.slane %v400, 2
        %v402 = vadd.f32 %v400, %v401
        %v403 = vrot.slane %v402, 1
        %v404 = vadd.f32 %v402, %v403
        %v405 = vrot.slane %v387, 4
        %v406 = vadd.f32 %v387, %v405
        %v407 = vrot.slane %v406, 2
        %v408 = vadd.f32 %v406, %v407
        %v409 = vrot.slane %v408, 1
        %v410 = vadd.f32 %v408, %v409
        %v411 = vrot.slane %v388, 4
        %v412 = vadd.f32 %v388, %v411
        %v413 = vrot.slane %v412, 2
        %v414 = vadd.f32 %v412, %v413
        %v415 = vrot.slane %v414, 1
        %v416 = vadd.f32 %v414, %v415
        %v417 = vrot.slane %v389, 4
        %v418 = vadd.f32 %v389, %v417
        %v419 = vrot.slane %v418, 2
        %v420 = vadd.f32 %v418, %v419
        %v421 = vrot.slane %v420, 1
        %v422 = vadd.f32 %v420, %v421
        %v423 = vrot.slane %v390, 4
        %v424 = vadd.f32 %v390, %v423
        %v425 = vrot.slane %v424, 2
        %v426 = vadd.f32 %v424, %v425
        %v427 = vrot.slane %v426, 1
        %v428 = vadd.f32 %v426, %v427
        %v429 = vrot.slane %v339, 4
        %v430 = vadd.f32 %v339, %v429
        %v431 = vrot.slane %v430, 2
        %v432 = vadd.f32 %v430, %v431
        %v433 = vrot.slane %v432, 1
        %v434 = vadd.f32 %v432, %v433
        %v435 = vrot.slane %v340, 4
        %v436 = vadd.f32 %v340, %v435
        %v437 = vrot.slane %v436, 2
        %v438 = vadd.f32 %v436, %v437
        %v439 = vrot.slane %v438, 1
        %v440 = vadd.f32 %v438, %v439
        %v441 = vrot.slane %v385, 4
        %v442 = vadd.f32 %v385, %v441
        %v443 = vrot.slane %v442, 2
        %v444 = vadd.f32 %v442, %v443
        %v445 = vrot.slane %v444, 1
        %v446 = vadd.f32 %v444, %v445
        %v447 = vrot.slane %v386, 4
        %v448 = vadd.f32 %v386, %v447
        %v449 = vrot.slane %v448, 2
        %v450 = vadd.f32 %v448, %v449
        %v451 = vrot.slane %v450, 1
        %v452 = vadd.f32 %v450, %v451
        %v453 = vld [vmem:[%s283] sm:$0x3]
        %vm456 = vcmask 1041409
        %v457 = vsel %vm456, %v404, %v398
        %v459 = vadd.f32 %v453, %v457
        %460 = vst [vmem:[%s283] sm:$0x3] %v459
        %s461 = scalar_lea.vmem %s283, 2 [#allocation8]
        %v462 = vld [vmem:[%s461] sm:$0x3]
        %v465 = vsel %vm456, %v416, %v410
        %v467 = vadd.f32 %v462, %v465
        %468 = vst [vmem:[%s461] sm:$0x3] %v467
        %s469 = scalar_lea.vmem %s283, 4 [#allocation8]
        %v470 = vld [vmem:[%s469] sm:$0x3]
        %v473 = vsel %vm456, %v428, %v422
        %v475 = vadd.f32 %v470, %v473
        %476 = vst [vmem:[%s469] sm:$0x3] %v475
        %s477 = scalar_lea.vmem %s283, 6 [#allocation8]
        %v478 = vld [vmem:[%s477] sm:$0x3]
        %v481 = vsel %vm456, %v440, %v434
        %v483 = vadd.f32 %v478, %v481
        %484 = vst [vmem:[%s477] sm:$0x3] %v483
        %s485 = scalar_lea.vmem %s283, 8 [#allocation8]
        %v486 = vld [vmem:[%s485] sm:$0x3]
        %v489 = vsel %vm456, %v452, %v446
        %v491 = vadd.f32 %v486, %v489
        %492 = vst [vmem:[%s485] sm:$0x3] %v491
        %s493 = sand.u32 %s127, 1
        %s494 = scalar_lea.sflag [#allocation4], %s493
        %s495 = sand.u32 %s127, 1
        %s496 = smul.addr %s495, 10
        %s497 = scalar_lea.vmem [#allocation8], %s496
        // Predicated region
        $region49: #{tpu_custom_call.1} parent=31 // pred_check
          %p498 = pneg %p137
        $region50: #{tpu_custom_call.1} parent=31 // pred_check_branch
          %500 = sbr.rel (%p498) target = $region52
        $region51: #{tpu_custom_call.1} parent=31 // pred_region
          %s502 = ssub.s32 160, 160
          %503 = vsyncadd %s494, %s502
          %s504 = smul.addr %s27, 5
          %s505 = smul.addr %s504, 32
          %s506 = scalar_lea.hbm %s3, %s505
          %s507 = sshll.u32 %s497, 4
          %s508 = int_to_ptr.vmem [resolvable:$true] %s507
          %513 = dma.vmem_to_hbm [thread:$0]  %s508, 160, %s506, %s494, 32, 32, 2
        $region52: #{tpu_custom_call.1} parent=31 // pred_fallthru
          _
      $region32: #{tpu_custom_call.1} parent=5 // pred_fallthru
        _
      %p514 = scmp.le.s32.totalorder 2, %s18
      // Predicated region
      $region53: #{tpu_custom_call.1} parent=5 // pred_check
        %p515 = pneg %p514
      $region54: #{tpu_custom_call.1} parent=5 // pred_check_branch
        %517 = sbr.rel (%p515) target = $region56
      $region55: #{tpu_custom_call.1} parent=5 // pred_region
        %s518 = ssub.s32 %s18, 2
        // Predicated region
        $region57: #{tpu_custom_call.1} parent=55 // pred_check
          %p519 = pneg %p143
        $region58: #{tpu_custom_call.1} parent=55 // pred_check_branch
          %521 = sbr.rel (%p519) target = $region60
        $region59: #{tpu_custom_call.1} parent=55 // pred_region
          %s522 = sand.u32 %s128, 1
          %s523 = scalar_lea.sflag [#allocation4], %s522
          %s524 = sand.u32 %s128, 1
          %s525 = smul.addr %s524, 10
          %s526 = scalar_lea.vmem [#allocation8], %s525
          %527 = dma.done %s523, 160
        $region60: #{tpu_custom_call.1} parent=55 // pred_fallthru
          _
      $region56: #{tpu_custom_call.1} parent=5 // pred_fallthru
        _
    $region6: #{tpu_custom_call.1} parent=1 // loop_footer
      %s22 = sadd.s32 1, %s18
    $region7: #{tpu_custom_call.1} parent=1 // loop_footer_branch
      %17 = sbr.rel target = $region3
    $region8: #{tpu_custom_call.1} parent=1 // loop_exit
      _
    %528 = vsyncpa [#allocation3], 1
    %s529 = scalar_lea.sflag [#allocation3], 1
    %530 = vsyncpa %s529, 1
    %531 = vsyncpa [#allocation6], 1
    %s532 = scalar_lea.sflag [#allocation6], 1
    %533 = vsyncpa %s532, 1
    %534 = vsyncpa [#allocation4], 1
    %s535 = scalar_lea.sflag [#allocation4], 1
    %536 = vsyncpa %s535, 1

</llo_original>
